<compile_context>
chip_gen: v5e
topology: v5e:2x2
jax: 0.10.0
libtpu: 0.0.40
codegen_flags: <defaults>
</compile_context>

<pallas_src>
import functools

import jax
import jax.numpy as jnp
from jax.experimental import pallas as pl
from jax.experimental.pallas import tpu as pltpu


def _round_up(x, m):
    return ((x + m - 1) // m) * m


def _single_buffered_spec(block_shape, index_map):
    """BlockSpec with single-buffering for grid-invariant operands."""
    try:
        return pl.BlockSpec(block_shape, index_map,
                            pipeline_mode=pl.Buffered(1))
    except Exception:  # pipeline_mode/Buffered(1) unsupported -> default spec
        return pl.BlockSpec(block_shape, index_map)


# ----------------------------------------------------------------------------
# ROIAlign pooler (gather-free: separable interpolation matrices, plain JAX)
# ----------------------------------------------------------------------------
def roi_align(features, rois, batch_idx, *, output_size, spatial_scale,
              sampling_ratio):
    """features: [N, C, H, W] f32, rois: [R, 4] (x1,y1,x2,y2) image coords,
    batch_idx: [R] int32. Returns pooled [R, C, P, P]."""
    N, C, H, W = features.shape
    P = output_size
    sr = sampling_ratio

    x1 = rois[:, 0] * spatial_scale
    y1 = rois[:, 1] * spatial_scale
    x2 = rois[:, 2] * spatial_scale
    y2 = rois[:, 3] * spatial_scale
    roi_w = jnp.maximum(x2 - x1, 1.0)
    roi_h = jnp.maximum(y2 - y1, 1.0)
    bin_w = roi_w / P
    bin_h = roi_h / P

    # sample positions (in "bin" units): P bins x sr samples per bin
    grid = (jnp.arange(P * sr, dtype=jnp.float32) + 0.5) / sr   # [S]
    ys = y1[:, None] + grid[None, :] * bin_h[:, None]           # [R, S]
    xs = x1[:, None] + grid[None, :] * bin_w[:, None]           # [R, S]

    def interp_matrix(coords, size):
        # coords: [R, S] -> per-ROI bilinear interpolation matrix with the
        # sr-sample-per-bin average folded in: [R, P, size].
        # TODO(synk): coordinates are clipped to [0, size-1]; maskrcnn-benchmark
        # zeroes samples outside [-1, size] then clamps — border boxes differ
        # slightly from PyTorch ROIAlign(aligned=False).
        c = jnp.clip(coords, 0.0, size - 1.0)
        c0 = jnp.floor(c)
        frac = c - c0
        i0 = c0.astype(jnp.int32)
        i1 = jnp.minimum(i0 + 1, size - 1)
        m = (jax.nn.one_hot(i0, size, dtype=jnp.float32) * (1.0 - frac)[..., None]
             + jax.nn.one_hot(i1, size, dtype=jnp.float32) * frac[..., None])
        return m.reshape(coords.shape[0], P, sr, size).mean(axis=2)

    Ay = interp_matrix(ys, H)                                   # [R, P, H]
    Ax = interp_matrix(xs, W)                                   # [R, P, W]
    Bsel = jax.nn.one_hot(batch_idx, N, dtype=features.dtype)   # [R, N]

    # pooled[r,c,i,j] = sum_{n,h,w} Bsel[r,n]*Ay[r,i,h]*feat[n,c,h,w]*Ax[r,j,w]
    # Fold the batch one-hot into the row-interp matrix FIRST so the largest
    # intermediate is [R,C,P,W] (no N factor), not [R,N,C,P,W].
    Ayb = jnp.einsum('rn,rih->rnih', Bsel, Ay)                  # [R, N, P, H] (small)
    t = jnp.einsum('rnih,nchw->rciw', Ayb, features)            # [R, C, P, W]
    pooled = jnp.einsum('rjw,rciw->rcij', Ax, t)                # [R, C, P, P]
    return pooled


# ----------------------------------------------------------------------------
# Pallas fused MLP head: fc6+ReLU -> fc7+ReLU -> fused (cls_score | bbox_pred)
# bf16 MXU operands, f32 accumulation / bias / ReLU.
# ----------------------------------------------------------------------------
def _box_head_kernel(x_ref, w6_ref, b6_ref, w7_ref, b7_ref, wp_ref, bp_ref,
                     feat_ref, pred_ref, acc_ref):
    k = pl.program_id(1)

    @pl.when(k == 0)
    def _():
        # fold the fc6 bias into the f32 accumulator init
        acc_ref[...] = jnp.zeros_like(acc_ref) + b6_ref[...]

    acc_ref[...] += jnp.dot(x_ref[...], w6_ref[...],
                            preferred_element_type=jnp.float32)

    @pl.when(k == pl.num_programs(1) - 1)
    def _():
        h6 = jnp.maximum(acc_ref[...], 0.0).astype(jnp.bfloat16)   # fc6 + ReLU
        h7 = jnp.dot(h6, w7_ref[...],
                     preferred_element_type=jnp.float32) + b7_ref[...]
        feat_ref[...] = jnp.maximum(h7, 0.0)                       # fc7 + ReLU (f32 out)
        # reuse the already-written output buffer as the predictor input
        pred_ref[...] = (jnp.dot(feat_ref[...].astype(jnp.bfloat16), wp_ref[...],
                                 preferred_element_type=jnp.float32)
                         + bp_ref[...])                            # cls|box fused


@functools.partial(jax.jit,
                   static_argnames=("hidden", "num_cls", "num_box", "tm", "tk"))
def box_head_mlp_predictor(pooled_flat, w6p, b6p, w7p, b7p, wpp, bpp, *,
                           hidden, num_cls, num_box, tm=512, tk=1024):
    """pooled_flat: [R, D] f32. Weights are pre-padded bf16 ([Dp,Hp],[Hp,Hp],
    [Hp,NP]), biases pre-padded f32. Returns (x [R, hidden],
    class_logits [R, num_cls], box_regression [R, num_box])."""
    R, D = pooled_flat.shape
    Dp, Hp = w6p.shape
    NP = wpp.shape[1]

    # ---- row tile: big enough to amortize pipeline overhead & reuse w6, but
    #      never larger than the (8-rounded) problem; production R gives >= 2
    #      row blocks -> both v7x TensorCores get work on the "parallel" axis.
    tm_eff = min(_round_up(tm, 8), _round_up(R, 8))
    Rp = _round_up(R, tm_eff)

    # ---- K tile: largest 128-multiple <= tk that divides Dp exactly
    #      (uniform K steps, no extra dead columns).
    nk = Dp // 128
    kb_max = max(1, min(nk, tk // 128))
    kb = max(d for d in range(1, kb_max + 1) if nk % d == 0)
    tk_eff = kb * 128

    x = jnp.pad(pooled_flat, ((0, Rp - R), (0, Dp - D))).astype(jnp.bfloat16)

    grid = (Rp // tm_eff, Dp // tk_eff)
    n_row_blocks = grid[0]

    flops = 2 * Rp * (Dp * Hp + Hp * Hp + Hp * NP)
    bytes_accessed = (
        2 * Rp * Dp                          # x (bf16, each tile read once)
        + 2 * n_row_blocks * Dp * Hp         # w6 re-streamed per row tile (bf16)
        + 2 * (Hp * Hp + Hp * NP)            # w7, wp (bf16, fetched once)
        + 4 * (2 * Hp + NP)                  # biases (f32)
        + 4 * (Rp * Hp + Rp * NP)            # outputs (f32)
    )

    feat, pred = pl.pallas_call(
        _box_head_kernel,
        out_shape=(
            jax.ShapeDtypeStruct((Rp, Hp), jnp.float32),
            jax.ShapeDtypeStruct((Rp, NP), jnp.float32),
        ),
        grid_spec=pltpu.PrefetchScalarGridSpec(
            num_scalar_prefetch=0,
            grid=grid,
            in_specs=[
                pl.BlockSpec((tm_eff, tk_eff), lambda i, k: (i, k)),   # x tile
                pl.BlockSpec((tk_eff, Hp), lambda i, k: (k, 0)),       # fc6 W (K-tiled)
                _single_buffered_spec((1, Hp), lambda i, k: (0, 0)),   # fc6 b
                _single_buffered_spec((Hp, Hp), lambda i, k: (0, 0)),  # fc7 W
                _single_buffered_spec((1, Hp), lambda i, k: (0, 0)),   # fc7 b
                _single_buffered_spec((Hp, NP), lambda i, k: (0, 0)),  # fused cls|box W
                _single_buffered_spec((1, NP), lambda i, k: (0, 0)),   # fused cls|box b
            ],
            out_specs=[
                pl.BlockSpec((tm_eff, Hp), lambda i, k: (i, 0)),       # features x
                pl.BlockSpec((tm_eff, NP), lambda i, k: (i, 0)),       # cls|box logits
            ],
            scratch_shapes=[pltpu.VMEM((tm_eff, Hp), jnp.float32)],    # fc6 accumulator
        ),
        compiler_params=pltpu.CompilerParams(
            dimension_semantics=("parallel", "arbitrary"),
            vmem_limit_bytes=48 * 1024 * 1024),
        cost_estimate=pl.CostEstimate(flops=flops, transcendentals=0,
                                      bytes_accessed=bytes_accessed),
    )(x, w6p, b6p, w7p, b7p, wpp, bpp)

    return (feat[:R, :hidden],
            pred[:R, :num_cls],
            pred[:R, num_cls:num_cls + num_box])


# ----------------------------------------------------------------------------
# ROIBoxHead wrapper (eval-mode forward)
# ----------------------------------------------------------------------------
class ROIBoxHeadPallas:
    def __init__(self, in_channels, *, pooler_resolution=4, spatial_scale=0.25,
                 sampling_ratio=2, representation_size=32, num_classes=8,
                 seed=0):
        self.P = pooler_resolution
        self.scale = spatial_scale
        self.sr = sampling_ratio
        self.hidden = representation_size
        self.num_classes = num_classes
        self.num_box = num_classes * 4

        in_dim = in_channels * pooler_resolution * pooler_resolution
        k = jax.random.split(jax.random.PRNGKey(seed), 4)
        # deterministic synthetic init (shapes match FPN2MLPFeatureExtractor + FPNPredictor)
        w6 = jax.random.normal(k[0], (in_dim, representation_size), jnp.float32) * 0.05
        b6 = jnp.zeros((1, representation_size), jnp.float32)
        w7 = jax.random.normal(k[1], (representation_size, representation_size),
                               jnp.float32) * 0.05
        b7 = jnp.zeros((1, representation_size), jnp.float32)
        wc = jax.random.normal(k[2], (representation_size, num_classes),
                               jnp.float32) * 0.01
        bc = jnp.zeros((1, num_classes), jnp.float32)
        wb = jax.random.normal(k[3], (representation_size, self.num_box),
                               jnp.float32) * 0.001
        bb = jnp.zeros((1, self.num_box), jnp.float32)

        # ---- pre-pad to lane/sublane multiples, pre-fuse cls|box, pre-cast to
        #      bf16 (done once here, NOT per forward).
        H = representation_size
        Dp = _round_up(in_dim, 128)
        Hp = _round_up(H, 128)
        NP = _round_up(num_classes + self.num_box, 128)

        self.w6p = jnp.pad(w6, ((0, Dp - in_dim), (0, Hp - H))).astype(jnp.bfloat16)
        self.b6p = jnp.pad(b6, ((0, 0), (0, Hp - H)))
        self.w7p = jnp.pad(w7, ((0, Hp - H), (0, Hp - H))).astype(jnp.bfloat16)
        self.b7p = jnp.pad(b7, ((0, 0), (0, Hp - H)))
        self.wpp = jnp.pad(jnp.concatenate([wc, wb], axis=1),
                           ((0, Hp - H), (0, NP - num_classes - self.num_box))
                           ).astype(jnp.bfloat16)
        self.bpp = jnp.pad(jnp.concatenate([bc, bb], axis=1),
                           ((0, 0), (0, NP - num_classes - self.num_box)))

    def __call__(self, features, proposals, batch_idx):
        """features: [N, C, H, W]; proposals: [R, 4] boxes in image coords;
        batch_idx: [R] which image each proposal belongs to."""
        # TODO(synk): single-level pooler only; the reference FPN pooler assigns
        # each ROI to a pyramid level.
        pooled = roi_align(features, proposals, batch_idx,
                           output_size=self.P, spatial_scale=self.scale,
                           sampling_ratio=self.sr)                  # [R, C, P, P]
        R = pooled.shape[0]
        pooled_flat = pooled.reshape(R, -1)                         # [R, C*P*P]
        x, class_logits, box_regression = box_head_mlp_predictor(
            pooled_flat, self.w6p, self.b6p, self.w7p, self.b7p,
            self.wpp, self.bpp,
            hidden=self.hidden, num_cls=self.num_classes, num_box=self.num_box)
        # TODO(synk): post_processor (softmax + box decode + NMS) omitted.
        return x, (class_logits, box_regression), {}


# ----------------------------------------------------------------------------
if __name__ == "__main__":
    key = jax.random.PRNGKey(0)
    k_feat, k_xy, k_wh = jax.random.split(key, 3)

    N, C, Hf, Wf = 2, 4, 16, 16          # feature maps (stride-4 of a 64x64 image)
    R_per_img = 4
    R = N * R_per_img

    features = jax.random.normal(k_feat, (N, C, Hf, Wf), jnp.float32)

    # deterministic proposal boxes in image coords (image size 64x64)
    xy1 = jax.random.uniform(k_xy, (R, 2), minval=0.0, maxval=36.0)
    wh = jax.random.uniform(k_wh, (R, 2), minval=8.0, maxval=24.0)
    proposals = jnp.concatenate([xy1, xy1 + wh], axis=1)            # [R, 4] x1,y1,x2,y2
    batch_idx = jnp.repeat(jnp.arange(N, dtype=jnp.int32), R_per_img)

    head = ROIBoxHeadPallas(in_channels=C, pooler_resolution=4, spatial_scale=0.25,
                            sampling_ratio=2, representation_size=32, num_classes=8,
                            seed=0)

    x, (class_logits, box_regression), losses = head(features, proposals, batch_idx)
    jax.block_until_ready((x, class_logits, box_regression))

    assert x.shape == (R, 32)
    assert class_logits.shape == (R, 8)
    assert box_regression.shape == (R, 32)
    assert losses == {}
    print("KERNEL_OK")
</pallas_src>

<mosaic_0001>
module attributes {stable_mosaic.version = 11 : i64} {
  func.func @_box_head_kernel(%arg0: i32, %arg1: i32, %arg2: memref<8x128xbf16, #tpu.memory_space<vmem>>, %arg3: memref<128x128xbf16, #tpu.memory_space<vmem>>, %arg4: memref<1x128xf32, #tpu.memory_space<vmem>>, %arg5: memref<128x128xbf16, #tpu.memory_space<vmem>>, %arg6: memref<1x128xf32, #tpu.memory_space<vmem>>, %arg7: memref<128x128xbf16, #tpu.memory_space<vmem>>, %arg8: memref<1x128xf32, #tpu.memory_space<vmem>>, %arg9: memref<8x128xf32, #tpu.memory_space<vmem>>, %arg10: memref<8x128xf32, #tpu.memory_space<vmem>>, %arg11: memref<8x128xf32, #tpu.memory_space<vmem>>) attributes {dimension_semantics = [#tpu.dimension_semantics<parallel>, #tpu.dimension_semantics<arbitrary>], iteration_bounds = array<i64: 1, 1>, scalar_prefetch = 0 : i64, scratch_operands = 1 : i64, tpu.core_type = #tpu.core_type<tc>, window_params = [{transform_indices = @transform_0, window_bounds = array<i64: 8, 128>}, {transform_indices = @transform_1, window_bounds = array<i64: 128, 128>}, {pipeline_mode = #tpu.pipeline_mode<synchronous>, transform_indices = @transform_2, window_bounds = array<i64: 1, 128>}, {pipeline_mode = #tpu.pipeline_mode<synchronous>, transform_indices = @transform_3, window_bounds = array<i64: 128, 128>}, {pipeline_mode = #tpu.pipeline_mode<synchronous>, transform_indices = @transform_4, window_bounds = array<i64: 1, 128>}, {pipeline_mode = #tpu.pipeline_mode<synchronous>, transform_indices = @transform_5, window_bounds = array<i64: 128, 128>}, {pipeline_mode = #tpu.pipeline_mode<synchronous>, transform_indices = @transform_6, window_bounds = array<i64: 1, 128>}, {transform_indices = @transform_7, window_bounds = array<i64: 8, 128>}, {transform_indices = @transform_8, window_bounds = array<i64: 8, 128>}]} {
    %c0_i32 = arith.constant 0 : i32
    %0 = arith.cmpi eq, %arg1, %c0_i32 : i32
    %1 = arith.extui %0 : i1 to i32
    %c0_i32_0 = arith.constant 0 : i32
    %2 = arith.cmpi ne, %1, %c0_i32_0 : i32
    scf.if %2 {
      %cst_10 = arith.constant 0.000000e+00 : f32
      %12 = vector.broadcast %cst_10 : f32 to vector<8x128xf32>
      %c0_11 = arith.constant 0 : index
      %c0_12 = arith.constant 0 : index
      %13 = vector.load %arg4[%c0_11, %c0_12] : memref<1x128xf32, #tpu.memory_space<vmem>>, vector<1x128xf32>
      %14 = vector.broadcast %13 : vector<1x128xf32> to vector<8x128xf32>
      %15 = arith.addf %12, %14 : vector<8x128xf32>
      %c0_13 = arith.constant 0 : index
      %c0_14 = arith.constant 0 : index
      %16 = vector.load %arg11[%c0_13, %c0_14] : memref<8x128xf32, #tpu.memory_space<vmem>>, vector<8x128xf32>
      tpu.vector_store %arg11[%c0_13, %c0_14], %15 {strides = array<i32>} : memref<8x128xf32, #tpu.memory_space<vmem>>, vector<8x128xf32>,
    } else {
    }
    %c0 = arith.constant 0 : index
    %c0_1 = arith.constant 0 : index
    %3 = vector.load %arg11[%c0, %c0_1] : memref<8x128xf32, #tpu.memory_space<vmem>>, vector<8x128xf32>
    %c0_2 = arith.constant 0 : index
    %c0_3 = arith.constant 0 : index
    %4 = vector.load %arg2[%c0_2, %c0_3] : memref<8x128xbf16, #tpu.memory_space<vmem>>, vector<8x128xbf16>
    %c0_4 = arith.constant 0 : index
    %c0_5 = arith.constant 0 : index
    %5 = vector.load %arg3[%c0_4, %c0_5] : memref<128x128xbf16, #tpu.memory_space<vmem>>, vector<128x128xbf16>
    %cst = arith.constant dense<0.000000e+00> : vector<8x128xf32>
    %6 = tpu.matmul %4, %5, %cst {dimension_numbers = #tpu.dot_dimension_numbers<[1], [0], [0], [1], [0, 0, 1, 1], [], []>} : vector<8x128xbf16>, vector<128x128xbf16>, vector<8x128xf32> -> vector<8x128xf32>
    %7 = arith.addf %3, %6 : vector<8x128xf32>
    %c0_6 = arith.constant 0 : index
    %c0_7 = arith.constant 0 : index
    %8 = vector.load %arg11[%c0_6, %c0_7] : memref<8x128xf32, #tpu.memory_space<vmem>>, vector<8x128xf32>
    tpu.vector_store %arg11[%c0_6, %c0_7], %7 {strides = array<i32>} : memref<8x128xf32, #tpu.memory_space<vmem>>, vector<8x128xf32>,
    %c0_i32_8 = arith.constant 0 : i32
    %9 = arith.cmpi eq, %arg1, %c0_i32_8 : i32
    %10 = arith.extui %9 : i1 to i32
    %c0_i32_9 = arith.constant 0 : i32
    %11 = arith.cmpi ne, %10, %c0_i32_9 : i32
    scf.if %11 {
      %c0_10 = arith.constant 0 : index
      %c0_11 = arith.constant 0 : index
      %12 = vector.load %arg11[%c0_10, %c0_11] : memref<8x128xf32, #tpu.memory_space<vmem>>, vector<8x128xf32>
      %cst_12 = arith.constant 0.000000e+00 : f32
      %13 = vector.broadcast %cst_12 : f32 to vector<8x128xf32>
      %14 = arith.maximumf %12, %13 : vector<8x128xf32>
      %15 = arith.truncf %14 : vector<8x128xf32> to vector<8x128xbf16>
      %c0_13 = arith.constant 0 : index
      %c0_14 = arith.constant 0 : index
      %16 = vector.load %arg5[%c0_13, %c0_14] : memref<128x128xbf16, #tpu.memory_space<vmem>>, vector<128x128xbf16>
      %cst_15 = arith.constant dense<0.000000e+00> : vector<8x128xf32>
      %17 = tpu.matmul %15, %16, %cst_15 {dimension_numbers = #tpu.dot_dimension_numbers<[1], [0], [0], [1], [0, 0, 1, 1], [], []>} : vector<8x128xbf16>, vector<128x128xbf16>, vector<8x128xf32> -> vector<8x128xf32>
      %c0_16 = arith.constant 0 : index
      %c0_17 = arith.constant 0 : index
      %18 = vector.load %arg6[%c0_16, %c0_17] : memref<1x128xf32, #tpu.memory_space<vmem>>, vector<1x128xf32>
      %19 = vector.broadcast %18 : vector<1x128xf32> to vector<8x128xf32>
      %20 = arith.addf %17, %19 : vector<8x128xf32>
      %cst_18 = arith.constant 0.000000e+00 : f32
      %21 = vector.broadcast %cst_18 : f32 to vector<8x128xf32>
      %22 = arith.maximumf %20, %21 : vector<8x128xf32>
      %c0_19 = arith.constant 0 : index
      %c0_20 = arith.constant 0 : index
      %23 = vector.load %arg9[%c0_19, %c0_20] : memref<8x128xf32, #tpu.memory_space<vmem>>, vector<8x128xf32>
      tpu.vector_store %arg9[%c0_19, %c0_20], %22 {strides = array<i32>} : memref<8x128xf32, #tpu.memory_space<vmem>>, vector<8x128xf32>,
      %c0_21 = arith.constant 0 : index
      %c0_22 = arith.constant 0 : index
      %24 = vector.load %arg9[%c0_21, %c0_22] : memref<8x128xf32, #tpu.memory_space<vmem>>, vector<8x128xf32>
      %25 = arith.truncf %24 : vector<8x128xf32> to vector<8x128xbf16>
      %c0_23 = arith.constant 0 : index
      %c0_24 = arith.constant 0 : index
      %26 = vector.load %arg7[%c0_23, %c0_24] : memref<128x128xbf16, #tpu.memory_space<vmem>>, vector<128x128xbf16>
      %cst_25 = arith.constant dense<0.000000e+00> : vector<8x128xf32>
      %27 = tpu.matmul %25, %26, %cst_25 {dimension_numbers = #tpu.dot_dimension_numbers<[1], [0], [0], [1], [0, 0, 1, 1], [], []>} : vector<8x128xbf16>, vector<128x128xbf16>, vector<8x128xf32> -> vector<8x128xf32>
      %c0_26 = arith.constant 0 : index
      %c0_27 = arith.constant 0 : index
      %28 = vector.load %arg8[%c0_26, %c0_27] : memref<1x128xf32, #tpu.memory_space<vmem>>, vector<1x128xf32>
      %29 = vector.broadcast %28 : vector<1x128xf32> to vector<8x128xf32>
      %30 = arith.addf %27, %29 : vector<8x128xf32>
      %c0_28 = arith.constant 0 : index
      %c0_29 = arith.constant 0 : index
      %31 = vector.load %arg10[%c0_28, %c0_29] : memref<8x128xf32, #tpu.memory_space<vmem>>, vector<8x128xf32>
      tpu.vector_store %arg10[%c0_28, %c0_29], %30 {strides = array<i32>} : memref<8x128xf32, #tpu.memory_space<vmem>>, vector<8x128xf32>,
    } else {
    }
    return
  }
  func.func @transform_0(%arg0: i32, %arg1: i32) -> (i32, i32) {
    %c0_i32 = arith.constant 0 : i32
    return %arg0, %arg1 : i32, i32
  }
  func.func @transform_1(%arg0: i32, %arg1: i32) -> (i32, i32) {
    %c0_i32 = arith.constant 0 : i32
    %c0_i32_0 = arith.constant 0 : i32
    return %arg1, %c0_i32 : i32, i32
  }
  func.func @transform_2(%arg0: i32, %arg1: i32) -> (i32, i32) {
    %c0_i32 = arith.constant 0 : i32
    %c0_i32_0 = arith.constant 0 : i32
    %c0_i32_1 = arith.constant 0 : i32
    return %c0_i32, %c0_i32_0 : i32, i32
  }
  func.func @transform_3(%arg0: i32, %arg1: i32) -> (i32, i32) {
    %c0_i32 = arith.constant 0 : i32
    %c0_i32_0 = arith.constant 0 : i32
    %c0_i32_1 = arith.constant 0 : i32
    return %c0_i32, %c0_i32_0 : i32, i32
  }
  func.func @transform_4(%arg0: i32, %arg1: i32) -> (i32, i32) {
    %c0_i32 = arith.constant 0 : i32
    %c0_i32_0 = arith.constant 0 : i32
    %c0_i32_1 = arith.constant 0 : i32
    return %c0_i32, %c0_i32_0 : i32, i32
  }
  func.func @transform_5(%arg0: i32, %arg1: i32) -> (i32, i32) {
    %c0_i32 = arith.constant 0 : i32
    %c0_i32_0 = arith.constant 0 : i32
    %c0_i32_1 = arith.constant 0 : i32
    return %c0_i32, %c0_i32_0 : i32, i32
  }
  func.func @transform_6(%arg0: i32, %arg1: i32) -> (i32, i32) {
    %c0_i32 = arith.constant 0 : i32
    %c0_i32_0 = arith.constant 0 : i32
    %c0_i32_1 = arith.constant 0 : i32
    return %c0_i32, %c0_i32_0 : i32, i32
  }
  func.func @transform_7(%arg0: i32, %arg1: i32) -> (i32, i32) {
    %c0_i32 = arith.constant 0 : i32
    %c0_i32_0 = arith.constant 0 : i32
    return %arg0, %c0_i32 : i32, i32
  }
  func.func @transform_8(%arg0: i32, %arg1: i32) -> (i32, i32) {
    %c0_i32 = arith.constant 0 : i32
    %c0_i32_0 = arith.constant 0 : i32
    return %arg0, %c0_i32 : i32, i32
  }
}

</mosaic_0001>

<llo_original>
// kernel: box_head_mlp_predictor.1
$region0: #{box_head_mlp_predictor.1}
  #allocation0 [shape = 'u32[]', space=smem, size = 0x4, offset = 0x4, fixed_abs, tag = 'smem constant byte address 0x4 - core index']
  #allocation1 [shape = 'u32[72,128]{1,0:T(1,128)}', space=vmem, size = 0x9000, scoped, tag = 'internal scratch']
  #allocation2 [shape = 'f32[8,128]{1,0:T(8,128)}', space=vmem, size = 0x1000, scoped, tag = 'scratch operand']
  %s0 = inlined_call_operand.vmem [shape: bf16[8,128], index: 0, kind: input, shape index: {}]
  %s1 = inlined_call_operand.hbm [shape: bf16[128,128], index: 1, kind: input, shape index: {}]
  %s2 = inlined_call_operand.vmem [shape: f32[1,128], index: 2, kind: input, shape index: {}]
  %s3 = inlined_call_operand.hbm [shape: bf16[128,128], index: 3, kind: input, shape index: {}]
  %s4 = inlined_call_operand.vmem [shape: f32[1,128], index: 4, kind: input, shape index: {}]
  %s5 = inlined_call_operand.hbm [shape: bf16[128,128], index: 5, kind: input, shape index: {}]
  %s6 = inlined_call_operand.vmem [shape: f32[1,128], index: 6, kind: input, shape index: {}]
  %s7 = inlined_call_operand.hbm [shape: f32[8,128], index: 7, kind: output, shape index: {0}]
  %s8 = inlined_call_operand.vmem [shape: f32[8,128], index: 8, kind: output, shape index: {1}]
  %9 = xla_tuple %s7, %s8
  %s10 = sld [smem:[#allocation0]]
  $region66: #{box_head_mlp_predictor.1} parent=0
    _
  %s12 = ssub.s32 1, %s10
  %s13 = scalar_select 0, %s12, %s10
  $region1: #{box_head_mlp_predictor.1} parent=0
    #allocation3 [shape = 'u8[32768]{0}', space=vmem, size = 0x8000, scoped, tag = 'input window, operand 1, single buffered']
    #allocation4 [shape = 's32[1]{0}', space=sflag, size = 0x4, scoped, tag = 'scoped memory for box_head_mlp_predictor.1']
    #allocation5 [shape = 's32[1]{0}', space=sflag, size = 0x4, scoped, tag = 'scoped memory for box_head_mlp_predictor.1']
    #allocation6 [shape = 'u8[32768]{0}', space=vmem, size = 0x8000, scoped, tag = 'input window, operand 3, single buffered']
    #allocation7 [shape = 's32[1]{0}', space=sflag, size = 0x4, scoped, tag = 'scoped memory for box_head_mlp_predictor.1']
    #allocation8 [shape = 'u8[32768]{0}', space=vmem, size = 0x8000, scoped, tag = 'input window, operand 5, single buffered']
    #allocation9 [shape = 'u8[4096]{0}', space=vmem, size = 0x1000, scoped, tag = 'output window, operand 0, single buffered']
    %14 = vsyncpa [#allocation4], 0
    %15 = vsyncpa [#allocation7], 0
    %16 = vsyncpa [#allocation5], 0
    // Predicated region
    $region2: #{box_head_mlp_predictor.1} parent=1 // pred_check
      _
    $region3: #{box_head_mlp_predictor.1} parent=1 // pred_check_branch
      %18 = sbr.rel (0) target = $region5
    $region4: #{box_head_mlp_predictor.1} parent=1 // pred_region
      _
    $region5: #{box_head_mlp_predictor.1} parent=1 // pred_fallthru
      _
    // Predicated region
    $region6: #{box_head_mlp_predictor.1} parent=1 // pred_check
      _
    $region7: #{box_head_mlp_predictor.1} parent=1 // pred_check_branch
      %20 = sbr.rel (0) target = $region9
    $region8: #{box_head_mlp_predictor.1} parent=1 // pred_region
      %22 = vsyncadd [#allocation4], 0
      %s23 = sshll.u32 %s1, 4
      %s24 = int_to_ptr.hbm [resolvable:$true] %s23
      %s25 = sshll.u32 [#allocation3], 4
      %s26 = int_to_ptr.vmem [resolvable:$true] %s25
      %31 = dma.hbm_to_vmem [thread:$0]  %s24, 1024, %s26, [#allocation4], 64, 64, 4
    $region9: #{box_head_mlp_predictor.1} parent=1 // pred_fallthru
      _
    // Predicated region
    $region10: #{box_head_mlp_predictor.1} parent=1 // pred_check
      _
    $region11: #{box_head_mlp_predictor.1} parent=1 // pred_check_branch
      %33 = sbr.rel (0) target = $region13
    $region12: #{box_head_mlp_predictor.1} parent=1 // pred_region
      _
    $region13: #{box_head_mlp_predictor.1} parent=1 // pred_fallthru
      _
    // Predicated region
    $region14: #{box_head_mlp_predictor.1} parent=1 // pred_check
      _
    $region15: #{box_head_mlp_predictor.1} parent=1 // pred_check_branch
      %35 = sbr.rel (0) target = $region17
    $region16: #{box_head_mlp_predictor.1} parent=1 // pred_region
      %37 = vsyncadd [#allocation7], 0
      %s38 = sshll.u32 %s3, 4
      %s39 = int_to_ptr.hbm [resolvable:$true] %s38
      %s40 = sshll.u32 [#allocation6], 4
      %s41 = int_to_ptr.vmem [resolvable:$true] %s40
      %46 = dma.hbm_to_vmem [thread:$0]  %s39, 1024, %s41, [#allocation7], 64, 64, 4
    $region17: #{box_head_mlp_predictor.1} parent=1 // pred_fallthru
      _
    // Predicated region
    $region18: #{box_head_mlp_predictor.1} parent=1 // pred_check
      _
    $region19: #{box_head_mlp_predictor.1} parent=1 // pred_check_branch
      %48 = sbr.rel (0) target = $region21
    $region20: #{box_head_mlp_predictor.1} parent=1 // pred_region
      _
    $region21: #{box_head_mlp_predictor.1} parent=1 // pred_fallthru
      _
    // Predicated region
    $region22: #{box_head_mlp_predictor.1} parent=1 // pred_check
      _
    $region23: #{box_head_mlp_predictor.1} parent=1 // pred_check_branch
      %50 = sbr.rel (0) target = $region25
    $region24: #{box_head_mlp_predictor.1} parent=1 // pred_region
      %52 = vsyncadd [#allocation7], 0
      %s53 = sshll.u32 %s5, 4
      %s54 = int_to_ptr.hbm [resolvable:$true] %s53
      %s55 = sshll.u32 [#allocation8], 4
      %s56 = int_to_ptr.vmem [resolvable:$true] %s55
      %61 = dma.hbm_to_vmem [thread:$0]  %s54, 1024, %s56, [#allocation7], 64, 64, 4
    $region25: #{box_head_mlp_predictor.1} parent=1 // pred_fallthru
      _
    // Predicated region
    $region26: #{box_head_mlp_predictor.1} parent=1 // pred_check
      _
    $region27: #{box_head_mlp_predictor.1} parent=1 // pred_check_branch
      %63 = sbr.rel (0) target = $region29
    $region28: #{box_head_mlp_predictor.1} parent=1 // pred_region
      _
    $region29: #{box_head_mlp_predictor.1} parent=1 // pred_fallthru
      _
    // Predicated region
    $region30: #{box_head_mlp_predictor.1} parent=1 // pred_check
      _
    $region31: #{box_head_mlp_predictor.1} parent=1 // pred_check_branch
      %65 = sbr.rel (0) target = $region33
    $region32: #{box_head_mlp_predictor.1} parent=1 // pred_region
      %67 = dma.done [#allocation4], 1024
    $region33: #{box_head_mlp_predictor.1} parent=1 // pred_fallthru
      _
    // Predicated region
    $region34: #{box_head_mlp_predictor.1} parent=1 // pred_check
      _
    $region35: #{box_head_mlp_predictor.1} parent=1 // pred_check_branch
      %69 = sbr.rel (0) target = $region37
    $region36: #{box_head_mlp_predictor.1} parent=1 // pred_region
      %71 = dma.done [#allocation7], 1024
    $region37: #{box_head_mlp_predictor.1} parent=1 // pred_fallthru
      _
    // Predicated region
    $region38: #{box_head_mlp_predictor.1} parent=1 // pred_check
      _
    $region39: #{box_head_mlp_predictor.1} parent=1 // pred_check_branch
      %73 = sbr.rel (0) target = $region41
    $region40: #{box_head_mlp_predictor.1} parent=1 // pred_region
      %75 = dma.done [#allocation7], 1024
    $region41: #{box_head_mlp_predictor.1} parent=1 // pred_fallthru
      _
    %p76 = scmp.eq.s32.totalorder 0, 0
    // Predicated region
    $region42: #{box_head_mlp_predictor.1} parent=1 // pred_check
      %p77 = pneg %p76
    $region43: #{box_head_mlp_predictor.1} parent=1 // pred_check_branch
      %79 = sbr.rel (%p77) target = $region45
    $region44: #{box_head_mlp_predictor.1} parent=1 // pred_region
      %v80 = vld [vmem:[%s2] sm:$0x1]
      %v82 = vperm.slane %v80, 0
      %v84 = vadd.f32 %v82, 0.0
      %85 = vst [vmem:[#allocation2] sm:$0xff] %v84
    $region45: #{box_head_mlp_predictor.1} parent=1 // pred_fallthru
      _
    %v86 = vld [vmem:[#allocation2] sm:$0xff]
    %v87 = vld [vmem:[%s0] sm:$0xf]
    %v88 = vld [vmem:[#allocation3] sm:$0xf]
    %v89 = vld [vmem:[#allocation3 + $0x4] sm:$0xf]
    %v90 = vld [vmem:[#allocation3 + $0x8] sm:$0xf]
    %v91 = vld [vmem:[#allocation3 + $0xc] sm:$0xf]
    %v92 = vld [vmem:[#allocation3 + $0x10] sm:$0xf]
    %v93 = vld [vmem:[#allocation3 + $0x14] sm:$0xf]
    %v94 = vld [vmem:[#allocation3 + $0x18] sm:$0xf]
    %v95 = vld [vmem:[#allocation3 + $0x1c] sm:$0xf]
    %v96 = vld [vmem:[#allocation3 + $0x20] sm:$0xf]
    %v97 = vld [vmem:[#allocation3 + $0x24] sm:$0xf]
    %v98 = vld [vmem:[#allocation3 + $0x28] sm:$0xf]
    %v99 = vld [vmem:[#allocation3 + $0x2c] sm:$0xf]
    %v100 = vld [vmem:[#allocation3 + $0x30] sm:$0xf]
    %v101 = vld [vmem:[#allocation3 + $0x34] sm:$0xf]
    %v102 = vld [vmem:[#allocation3 + $0x38] sm:$0xf]
    %v103 = vld [vmem:[#allocation3 + $0x3c] sm:$0xf]
    %v120 = vunpack.c.l.b16 %v88
    %v121 = vunpack.c.l.b16 %v89
    %v122 = vunpack.c.l.b16 %v90
    %v123 = vunpack.c.l.b16 %v91
    %v124 = vunpack.c.l.b16 %v92
    %v125 = vunpack.c.l.b16 %v93
    %v126 = vunpack.c.l.b16 %v94
    %v127 = vunpack.c.l.b16 %v95
    %v128 = vunpack.c.l.b16 %v96
    %v129 = vunpack.c.l.b16 %v97
    %v130 = vunpack.c.l.b16 %v98
    %v131 = vunpack.c.l.b16 %v99
    %v132 = vunpack.c.l.b16 %v100
    %v133 = vunpack.c.l.b16 %v101
    %v134 = vunpack.c.l.b16 %v102
    %v135 = vunpack.c.l.b16 %v103
    %v136 = vpack.c.b16 %v121, %v120
    %v137 = vpack.c.b16 %v123, %v122
    %v138 = vpack.c.b16 %v125, %v124
    %v139 = vpack.c.b16 %v127, %v126
    %v140 = vpack.c.b16 %v129, %v128
    %v141 = vpack.c.b16 %v131, %v130
    %v142 = vpack.c.b16 %v133, %v132
    %v143 = vpack.c.b16 %v135, %v134
    %152 = vmatpush.bf16.msra.mxu0 %v143
    %153 = vmatpush.bf16.msra.mxu0 %v142
    %154 = vmatpush.bf16.msra.mxu0 %v141
    %155 = vmatpush.bf16.msra.mxu0 %v140
    %156 = vmatpush.bf16.msra.mxu0 %v139
    %157 = vmatpush.bf16.msra.mxu0 %v138
    %158 = vmatpush.bf16.msra.mxu0 %v137
    %159 = vmatpush.bf16.msra.mxu0 %v136
    %160 = vmatmul.bf16.gmra.mxu0 %v87
    %v161 = vpop.f32.mrf.mxu0
    %v162 = vadd.f32 0.0, %v161
    %v163 = vpop.f32.mrf.mxu0
    %164 = vdwg.mxu0
    %v165 = vadd.f32 %v86, %v162
    %166 = vst [vmem:[#allocation2] sm:$0xff] %v165
    // Predicated region
    $region46: #{box_head_mlp_predictor.1} parent=1 // pred_check
      %p167 = pneg %p76
    $region47: #{box_head_mlp_predictor.1} parent=1 // pred_check_branch
      %169 = sbr.rel (%p167) target = $region49
    $region48: #{box_head_mlp_predictor.1} parent=1 // pred_region
      %v170 = vld [vmem:[#allocation2] sm:$0xff]
      %v171 = vmax.f32 %v170, 0.0
      %v172 = vpack.c.bf16 %v171, %v171
      %v173 = vld [vmem:[#allocation6] sm:$0xf]
      %v174 = vld [vmem:[#allocation6 + $0x4] sm:$0xf]
      %v175 = vld [vmem:[#allocation6 + $0x8] sm:$0xf]
      %v176 = vld [vmem:[#allocation6 + $0xc] sm:$0xf]
      %v177 = vld [vmem:[#allocation6 + $0x10] sm:$0xf]
      %v178 = vld [vmem:[#allocation6 + $0x14] sm:$0xf]
      %v179 = vld [vmem:[#allocation6 + $0x18] sm:$0xf]
      %v180 = vld [vmem:[#allocation6 + $0x1c] sm:$0xf]
      %v181 = vld [vmem:[#allocation6 + $0x20] sm:$0xf]
      %v182 = vld [vmem:[#allocation6 + $0x24] sm:$0xf]
      %v183 = vld [vmem:[#allocation6 + $0x28] sm:$0xf]
      %v184 = vld [vmem:[#allocation6 + $0x2c] sm:$0xf]
      %v185 = vld [vmem:[#allocation6 + $0x30] sm:$0xf]
      %v186 = vld [vmem:[#allocation6 + $0x34] sm:$0xf]
      %v187 = vld [vmem:[#allocation6 + $0x38] sm:$0xf]
      %v188 = vld [vmem:[#allocation6 + $0x3c] sm:$0xf]
      %v189 = vld [vmem:[%s4] sm:$0x1]
      %v191 = vperm.slane %v189, 0
      %v209 = vunpack.c.l.b16 %v173
      %v210 = vunpack.c.l.b16 %v174
      %v211 = vunpack.c.l.b16 %v175
      %v212 = vunpack.c.l.b16 %v176
      %v213 = vunpack.c.l.b16 %v177
      %v214 = vunpack.c.l.b16 %v178
      %v215 = vunpack.c.l.b16 %v179
      %v216 = vunpack.c.l.b16 %v180
      %v217 = vunpack.c.l.b16 %v181
      %v218 = vunpack.c.l.b16 %v182
      %v219 = vunpack.c.l.b16 %v183
      %v220 = vunpack.c.l.b16 %v184
      %v221 = vunpack.c.l.b16 %v185
      %v222 = vunpack.c.l.b16 %v186
      %v223 = vunpack.c.l.b16 %v187
      %v224 = vunpack.c.l.b16 %v188
      %v225 = vpack.c.b16 %v210, %v209
      %v226 = vpack.c.b16 %v212, %v211
      %v227 = vpack.c.b16 %v214, %v213
      %v228 = vpack.c.b16 %v216, %v215
      %v229 = vpack.c.b16 %v218, %v217
      %v230 = vpack.c.b16 %v220, %v219
      %v231 = vpack.c.b16 %v222, %v221
      %v232 = vpack.c.b16 %v224, %v223
      %241 = vmatpush.bf16.msra.mxu0 %v232
      %242 = vmatpush.bf16.msra.mxu0 %v231
      %243 = vmatpush.bf16.msra.mxu0 %v230
      %244 = vmatpush.bf16.msra.mxu0 %v229
      %245 = vmatpush.bf16.msra.mxu0 %v228
      %246 = vmatpush.bf16.msra.mxu0 %v227
      %247 = vmatpush.bf16.msra.mxu0 %v226
      %248 = vmatpush.bf16.msra.mxu0 %v225
      %249 = vmatmul.bf16.gmra.mxu0 %v172
      %v250 = vpop.f32.mrf.mxu0
      %v251 = vadd.f32 %v191, %v250
      %v252 = vpop.f32.mrf.mxu0
      %253 = vdwg.mxu0
      %v254 = vmax.f32 %v251, 0.0
      %255 = vst [vmem:[#allocation9] sm:$0xff] %v254
      %v256 = vld [vmem:[#allocation9] sm:$0xff]
      %v257 = vpack.c.bf16 %v256, %v256
      %v258 = vld [vmem:[#allocation8] sm:$0xf]
      %v259 = vld [vmem:[#allocation8 + $0x4] sm:$0xf]
      %v260 = vld [vmem:[#allocation8 + $0x8] sm:$0xf]
      %v261 = vld [vmem:[#allocation8 + $0xc] sm:$0xf]
      %v262 = vld [vmem:[#allocation8 + $0x10] sm:$0xf]
      %v263 = vld [vmem:[#allocation8 + $0x14] sm:$0xf]
      %v264 = vld [vmem:[#allocation8 + $0x18] sm:$0xf]
      %v265 = vld [vmem:[#allocation8 + $0x1c] sm:$0xf]
      %v266 = vld [vmem:[#allocation8 + $0x20] sm:$0xf]
      %v267 = vld [vmem:[#allocation8 + $0x24] sm:$0xf]
      %v268 = vld [vmem:[#allocation8 + $0x28] sm:$0xf]
      %v269 = vld [vmem:[#allocation8 + $0x2c] sm:$0xf]
      %v270 = vld [vmem:[#allocation8 + $0x30] sm:$0xf]
      %v271 = vld [vmem:[#allocation8 + $0x34] sm:$0xf]
      %v272 = vld [vmem:[#allocation8 + $0x38] sm:$0xf]
      %v273 = vld [vmem:[#allocation8 + $0x3c] sm:$0xf]
      %v274 = vld [vmem:[%s6] sm:$0x1]
      %v276 = vperm.slane %v274, 0
      %v294 = vunpack.c.l.b16 %v258
      %v295 = vunpack.c.l.b16 %v259
      %v296 = vunpack.c.l.b16 %v260
      %v297 = vunpack.c.l.b16 %v261
      %v298 = vunpack.c.l.b16 %v262
      %v299 = vunpack.c.l.b16 %v263
      %v300 = vunpack.c.l.b16 %v264
      %v301 = vunpack.c.l.b16 %v265
      %v302 = vunpack.c.l.b16 %v266
      %v303 = vunpack.c.l.b16 %v267
      %v304 = vunpack.c.l.b16 %v268
      %v305 = vunpack.c.l.b16 %v269
      %v306 = vunpack.c.l.b16 %v270
      %v307 = vunpack.c.l.b16 %v271
      %v308 = vunpack.c.l.b16 %v272
      %v309 = vunpack.c.l.b16 %v273
      %v310 = vpack.c.b16 %v295, %v294
      %v311 = vpack.c.b16 %v297, %v296
      %v312 = vpack.c.b16 %v299, %v298
      %v313 = vpack.c.b16 %v301, %v300
      %v314 = vpack.c.b16 %v303, %v302
      %v315 = vpack.c.b16 %v305, %v304
      %v316 = vpack.c.b16 %v307, %v306
      %v317 = vpack.c.b16 %v309, %v308
      %326 = vmatpush.bf16.msra.mxu0 %v317
      %327 = vmatpush.bf16.msra.mxu0 %v316
      %328 = vmatpush.bf16.msra.mxu0 %v315
      %329 = vmatpush.bf16.msra.mxu0 %v314
      %330 = vmatpush.bf16.msra.mxu0 %v313
      %331 = vmatpush.bf16.msra.mxu0 %v312
      %332 = vmatpush.bf16.msra.mxu0 %v311
      %333 = vmatpush.bf16.msra.mxu0 %v310
      %334 = vmatmul.bf16.gmra.mxu0 %v257
      %v335 = vpop.f32.mrf.mxu0
      %v336 = vadd.f32 %v276, %v335
      %v337 = vpop.f32.mrf.mxu0
      %338 = vdwg.mxu0
      %339 = vst [vmem:[%s8] sm:$0xff] %v336
    $region49: #{box_head_mlp_predictor.1} parent=1 // pred_fallthru
      _
    // Predicated region
    $region50: #{box_head_mlp_predictor.1} parent=1 // pred_check
      _
    $region51: #{box_head_mlp_predictor.1} parent=1 // pred_check_branch
      %341 = sbr.rel (0) target = $region53
    $region52: #{box_head_mlp_predictor.1} parent=1 // pred_region
      %343 = vsyncadd [#allocation5], 0
      %s345 = sshll.u32 [#allocation9], 4
      %s346 = int_to_ptr.vmem [resolvable:$true] %s345
      %s347 = sshll.u32 %s7, 4
      %s348 = int_to_ptr.hbm [resolvable:$true] %s347
      %350 = dma.vmem_to_hbm [thread:$0]  %s346, 128, %s348, [#allocation5]
    $region53: #{box_head_mlp_predictor.1} parent=1 // pred_fallthru
      _
    // Predicated region
    $region54: #{box_head_mlp_predictor.1} parent=1 // pred_check
      _
    $region55: #{box_head_mlp_predictor.1} parent=1 // pred_check_branch
      %352 = sbr.rel (0) target = $region57
    $region56: #{box_head_mlp_predictor.1} parent=1 // pred_region
      _
    $region57: #{box_head_mlp_predictor.1} parent=1 // pred_fallthru
      _
    // Predicated region
    $region58: #{box_head_mlp_predictor.1} parent=1 // pred_check
      _
    $region59: #{box_head_mlp_predictor.1} parent=1 // pred_check_branch
      %354 = sbr.rel (0) target = $region61
    $region60: #{box_head_mlp_predictor.1} parent=1 // pred_region
      %356 = dma.done [#allocation5], 128
    $region61: #{box_head_mlp_predictor.1} parent=1 // pred_fallthru
      _
    // Predicated region
    $region62: #{box_head_mlp_predictor.1} parent=1 // pred_check
      _
    $region63: #{box_head_mlp_predictor.1} parent=1 // pred_check_branch
      %358 = sbr.rel (0) target = $region65
    $region64: #{box_head_mlp_predictor.1} parent=1 // pred_region
      _
    $region65: #{box_head_mlp_predictor.1} parent=1 // pred_fallthru
      _
    %359 = vsyncpa [#allocation4], 1
    %360 = vsyncpa [#allocation7], 1
    %361 = vsyncpa [#allocation5], 1

</llo_original>
